<compile_context>
chip_gen: v7x
topology: tpu7x:2x2x1
jax: 0.10.0
libtpu: 0.0.40
codegen_flags: <defaults>
</compile_context>

<pallas_src>
import jax
import jax.numpy as jnp
from jax.experimental import pallas as pl
from jax.experimental.pallas import tpu as pltpu


def _make_multi_transform_kernel(K):
    def kernel(x_ref, scale_ref, bias_ref, *o_refs):
        # x_ref:     (TNC, THW)   input tile, read once per spatial tile
        # scale_ref: (K, TNC, 1)  float32 per-row scales (grid-resident over j)
        # bias_ref:  (K, TNC, 1)  float32 per-row biases
        # o_refs[k]: (TNC, THW)   output tile of transform k
        x = x_ref[...].astype(jnp.float32)
        for k in range(K):                      # K is a small compile-time const
            s = scale_ref[k]                    # (TNC, 1) -> broadcast over lanes
            b = bias_ref[k]
            o_refs[k][...] = (x * s + b).astype(o_refs[k].dtype)
    return kernel


def _sublane_align(dtype):
    """Native sublane tiling for the dtype (8 f32, 16 bf16/f16, 32 int8/fp8)."""
    bits = jnp.dtype(dtype).itemsize * 8
    if bits >= 32:
        return 8
    if bits == 16:
        return 16
    return 32


def _pick_tile(dim, align, target):
    """Largest multiple of `align` dividing `dim` that is <= `target` (0 if dim
    is not a multiple of `align`)."""
    if dim % align != 0:
        return 0
    if dim <= target:
        return dim
    t = (min(target, dim) // align) * align
    while t >= align:
        if dim % t == 0:
            return t
        t -= align
    return align  # align always divides dim here


def _step_vmem_bytes(tnc, thw, K, itemsize):
    """Double-buffered input + K double-buffered outputs + lane-padded params."""
    tile = tnc * thw * itemsize
    params = 2 * K * tnc * 128 * 4          # scale + bias, f32, padded to 128 lanes
    return 2 * (1 + K) * tile + 2 * params


def _plan_tiles(NCp, HWp, K, itemsize, align, budget,
                tnc_target, thw_target, nc_aligned):
    if nc_aligned:
        TNC = _pick_tile(NCp, align, tnc_target) or NCp
    else:
        TNC = NCp                            # full-extent row block (always legal)
    THW = _pick_tile(HWp, 128, thw_target) or HWp

    # Shrink (lane dim first) until double-buffered tiles fit the VMEM budget.
    while _step_vmem_bytes(TNC, THW, K, itemsize) > budget:
        if THW > 128:
            THW = _pick_tile(HWp, 128, max(128, THW // 2)) or 128
        elif nc_aligned and TNC > align:
            TNC = _pick_tile(NCp, align, max(align, TNC // 2)) or align
        else:
            break                            # cannot shrink further

    # Make sure both v7x TensorCores get work: aim for >= 2 spatial tiles.
    if (NCp // TNC) * (HWp // THW) < 2:
        if HWp // THW < 2 and HWp >= 256:
            THW = _pick_tile(HWp, 128, HWp // 2) or THW
        elif nc_aligned and NCp // TNC < 2 and NCp >= 2 * align:
            TNC = _pick_tile(NCp, align, NCp // 2) or TNC
    return TNC, THW


def multiple_transform(x, means, stds, *, tnc_target=512, thw_target=4096):
    """Apply K per-channel affine normalizations to x in one fused kernel.

    Args:
      x:     [N, C, H, W]
      means: [K, C]
      stds:  [K, C]
    Returns:
      List of K arrays [N, C, H, W]; entry k equals (x - means[k]) / stds[k]
      (matches the PyTorch module's list-of-outputs contract).
    """
    N, C, H, W = x.shape
    K = means.shape[0]
    NC, HW = N * C, H * W
    itemsize = jnp.dtype(x.dtype).itemsize
    align = _sublane_align(x.dtype)

    # Per-generation VMEM budget (<=48 MiB on 64 MiB v7x, <=96 MiB on 128 MiB parts).
    try:
        phys_vmem = int(pltpu.get_tpu_info().vmem_capacity_bytes)
    except Exception:
        phys_vmem = 64 * 1024 * 1024        # v7x-safe fallback
    budget = min(96 * 1024 * 1024, (phys_vmem * 3) // 4)

    # Lane padding: keep output stores unmasked (last dim a multiple of 128).
    HWp = ((HW + 127) // 128) * 128
    x_flat = x.reshape(NC, HW)
    if HWp != HW:
        x_flat = jnp.pad(x_flat, ((0, 0), (0, HWp - HW)))

    # Row handling: aligned tile when possible; otherwise a full-extent row
    # block is legal — pad rows only if that full block could not fit VMEM.
    nc_aligned = (NC % align == 0)
    NCp = NC
    if not nc_aligned:
        if _step_vmem_bytes(NC, 128, K, itemsize) > budget:
            NCp = ((NC + align - 1) // align) * align
            x_flat = jnp.pad(x_flat, ((0, NCp - NC), (0, 0)))
            nc_aligned = True

    TNC, THW = _plan_tiles(NCp, HWp, K, itemsize, align, budget,
                           tnc_target, thw_target, nc_aligned)
    grid = (NCp // TNC, HWp // THW)

    # Fold (x - mean) / std  ->  x * scale + bias, kept in float32 so reduced
    # precision inputs don't drift; cast happens only on store in the kernel.
    means_f = means.astype(jnp.float32)
    stds_f = stds.astype(jnp.float32)
    scale = 1.0 / stds_f                                            # [K, C]
    bias = -means_f / stds_f                                        # [K, C]
    scale_full = jnp.broadcast_to(scale[:, None, :], (K, N, C)).reshape(K, NC)
    bias_full = jnp.broadcast_to(bias[:, None, :], (K, N, C)).reshape(K, NC)
    if NCp != NC:
        scale_full = jnp.pad(scale_full, ((0, 0), (0, NCp - NC)),
                             constant_values=1.0)
        bias_full = jnp.pad(bias_full, ((0, 0), (0, NCp - NC)))
    scale_full = scale_full[..., None]                              # [K, NCp, 1]
    bias_full = bias_full[..., None]                                # [K, NCp, 1]

    cost = pl.CostEstimate(
        flops=2 * K * NCp * HWp,
        transcendentals=0,
        bytes_accessed=(1 + K) * NCp * HWp * itemsize + 2 * K * NCp * 4,
    )

    outs = pl.pallas_call(
        _make_multi_transform_kernel(K),
        out_shape=tuple(
            jax.ShapeDtypeStruct((NCp, HWp), x.dtype) for _ in range(K)),
        grid_spec=pltpu.PrefetchScalarGridSpec(
            num_scalar_prefetch=0,
            grid=grid,
            in_specs=[
                # x tile: DMA'd once per (i, j), reused for all K transforms.
                pl.BlockSpec((TNC, THW), lambda i, j: (i, j)),
                # All K scales/biases for this row tile; constant over j.
                pl.BlockSpec((K, TNC, 1), lambda i, j: (0, i, 0)),
                pl.BlockSpec((K, TNC, 1), lambda i, j: (0, i, 0)),
            ],
            out_specs=tuple(
                pl.BlockSpec((TNC, THW), lambda i, j: (i, j))
                for _ in range(K)),
        ),
        compiler_params=pltpu.CompilerParams(
            dimension_semantics=("parallel", "parallel"),
            vmem_limit_bytes=int(budget),
        ),
        cost_estimate=cost,
    )(x_flat, scale_full, bias_full)

    results = []
    for k in range(K):
        ok = outs[k]
        if NCp != NC or HWp != HW:
            ok = ok[:NC, :HW]   # extra copy only for ragged (padded) shapes
        results.append(ok.reshape(N, C, H, W))
    return results


if __name__ == "__main__":
    key = jax.random.PRNGKey(0)

    # Small shapes consistent with an image-style forward.
    N, C, H, W = 2, 4, 16, 16
    K = 3  # number of transforms in the list

    x = jax.random.normal(key, (N, C, H, W), dtype=jnp.float32)

    # Deterministic per-transform, per-channel normalization parameters.
    means = jnp.stack([
        jnp.linspace(-0.5 + 0.1 * k, 0.5 + 0.1 * k, C, dtype=jnp.float32)
        for k in range(K)
    ])                                                     # [K, C]
    stds = jnp.stack([
        jnp.linspace(0.5 + 0.2 * k, 1.5 + 0.2 * k, C, dtype=jnp.float32)
        for k in range(K)
    ])                                                     # [K, C]

    outs = multiple_transform(x, means, stds)
    outs = [jax.block_until_ready(o) for o in outs]

    # Reference (same semantics as the PyTorch list comprehension).
    ref = [
        (x - means[k][None, :, None, None]) / stds[k][None, :, None, None]
        for k in range(K)
    ]
    assert len(outs) == K and all(o.shape == (N, C, H, W) for o in outs)
    for k in range(K):
        assert jnp.allclose(outs[k], ref[k], atol=1e-5, rtol=1e-5)

    print("KERNEL_OK")
</pallas_src>

<mosaic_0001>
module attributes {stable_mosaic.version = 11 : i64} {
  func.func @kernel(%arg0: i32, %arg1: i32, %arg2: memref<8x128xf32, #tpu.memory_space<vmem>>, %arg3: memref<3x8x1xf32, #tpu.memory_space<vmem>>, %arg4: memref<3x8x1xf32, #tpu.memory_space<vmem>>, %arg5: memref<8x128xf32, #tpu.memory_space<vmem>>, %arg6: memref<8x128xf32, #tpu.memory_space<vmem>>, %arg7: memref<8x128xf32, #tpu.memory_space<vmem>>) attributes {dimension_semantics = [#tpu.dimension_semantics<parallel>, #tpu.dimension_semantics<parallel>], iteration_bounds = array<i64: 1, 2>, scalar_prefetch = 0 : i64, scratch_operands = 0 : i64, tpu.core_type = #tpu.core_type<tc>, window_params = [{transform_indices = @transform_0, window_bounds = array<i64: 8, 128>}, {transform_indices = @transform_1, window_bounds = array<i64: 3, 8, 1>}, {transform_indices = @transform_2, window_bounds = array<i64: 3, 8, 1>}, {transform_indices = @transform_3, window_bounds = array<i64: 8, 128>}, {transform_indices = @transform_4, window_bounds = array<i64: 8, 128>}, {transform_indices = @transform_5, window_bounds = array<i64: 8, 128>}]} {
    %c0 = arith.constant 0 : index
    %c0_0 = arith.constant 0 : index
    %0 = vector.load %arg2[%c0, %c0_0] : memref<8x128xf32, #tpu.memory_space<vmem>>, vector<8x128xf32>
    %c0_1 = arith.constant 0 : index
    %c0_2 = arith.constant 0 : index
    %c0_3 = arith.constant 0 : index
    %1 = vector.load %arg3[%c0_1, %c0_2, %c0_3] : memref<3x8x1xf32, #tpu.memory_space<vmem>>, vector<1x8x1xf32>
    %2 = vector.shape_cast %1 : vector<1x8x1xf32> to vector<8x1xf32>
    %c0_4 = arith.constant 0 : index
    %c0_5 = arith.constant 0 : index
    %c0_6 = arith.constant 0 : index
    %3 = vector.load %arg4[%c0_4, %c0_5, %c0_6] : memref<3x8x1xf32, #tpu.memory_space<vmem>>, vector<1x8x1xf32>
    %4 = vector.shape_cast %3 : vector<1x8x1xf32> to vector<8x1xf32>
    %5 = vector.broadcast %2 : vector<8x1xf32> to vector<8x128xf32>
    %6 = arith.mulf %0, %5 : vector<8x128xf32>
    %7 = vector.broadcast %4 : vector<8x1xf32> to vector<8x128xf32>
    %8 = arith.addf %6, %7 : vector<8x128xf32>
    %c0_7 = arith.constant 0 : index
    %c0_8 = arith.constant 0 : index
    %9 = vector.load %arg5[%c0_7, %c0_8] : memref<8x128xf32, #tpu.memory_space<vmem>>, vector<8x128xf32>
    tpu.vector_store %arg5[%c0_7, %c0_8], %8 {strides = array<i32>} : memref<8x128xf32, #tpu.memory_space<vmem>>, vector<8x128xf32>,
    %c1 = arith.constant 1 : index
    %c0_9 = arith.constant 0 : index
    %c0_10 = arith.constant 0 : index
    %10 = vector.load %arg3[%c1, %c0_9, %c0_10] : memref<3x8x1xf32, #tpu.memory_space<vmem>>, vector<1x8x1xf32>
    %11 = vector.shape_cast %10 : vector<1x8x1xf32> to vector<8x1xf32>
    %c1_11 = arith.constant 1 : index
    %c0_12 = arith.constant 0 : index
    %c0_13 = arith.constant 0 : index
    %12 = vector.load %arg4[%c1_11, %c0_12, %c0_13] : memref<3x8x1xf32, #tpu.memory_space<vmem>>, vector<1x8x1xf32>
    %13 = vector.shape_cast %12 : vector<1x8x1xf32> to vector<8x1xf32>
    %14 = vector.broadcast %11 : vector<8x1xf32> to vector<8x128xf32>
    %15 = arith.mulf %0, %14 : vector<8x128xf32>
    %16 = vector.broadcast %13 : vector<8x1xf32> to vector<8x128xf32>
    %17 = arith.addf %15, %16 : vector<8x128xf32>
    %c0_14 = arith.constant 0 : index
    %c0_15 = arith.constant 0 : index
    %18 = vector.load %arg6[%c0_14, %c0_15] : memref<8x128xf32, #tpu.memory_space<vmem>>, vector<8x128xf32>
    tpu.vector_store %arg6[%c0_14, %c0_15], %17 {strides = array<i32>} : memref<8x128xf32, #tpu.memory_space<vmem>>, vector<8x128xf32>,
    %c2 = arith.constant 2 : index
    %c0_16 = arith.constant 0 : index
    %c0_17 = arith.constant 0 : index
    %19 = vector.load %arg3[%c2, %c0_16, %c0_17] : memref<3x8x1xf32, #tpu.memory_space<vmem>>, vector<1x8x1xf32>
    %20 = vector.shape_cast %19 : vector<1x8x1xf32> to vector<8x1xf32>
    %c2_18 = arith.constant 2 : index
    %c0_19 = arith.constant 0 : index
    %c0_20 = arith.constant 0 : index
    %21 = vector.load %arg4[%c2_18, %c0_19, %c0_20] : memref<3x8x1xf32, #tpu.memory_space<vmem>>, vector<1x8x1xf32>
    %22 = vector.shape_cast %21 : vector<1x8x1xf32> to vector<8x1xf32>
    %23 = vector.broadcast %20 : vector<8x1xf32> to vector<8x128xf32>
    %24 = arith.mulf %0, %23 : vector<8x128xf32>
    %25 = vector.broadcast %22 : vector<8x1xf32> to vector<8x128xf32>
    %26 = arith.addf %24, %25 : vector<8x128xf32>
    %c0_21 = arith.constant 0 : index
    %c0_22 = arith.constant 0 : index
    %27 = vector.load %arg7[%c0_21, %c0_22] : memref<8x128xf32, #tpu.memory_space<vmem>>, vector<8x128xf32>
    tpu.vector_store %arg7[%c0_21, %c0_22], %26 {strides = array<i32>} : memref<8x128xf32, #tpu.memory_space<vmem>>, vector<8x128xf32>,
    return
  }
  func.func @transform_0(%arg0: i32, %arg1: i32) -> (i32, i32) {
    %c0_i32 = arith.constant 0 : i32
    return %arg0, %arg1 : i32, i32
  }
  func.func @transform_1(%arg0: i32, %arg1: i32) -> (i32, i32, i32) {
    %c0_i32 = arith.constant 0 : i32
    %c0_i32_0 = arith.constant 0 : i32
    %c0_i32_1 = arith.constant 0 : i32
    return %c0_i32, %arg0, %c0_i32_0 : i32, i32, i32
  }
  func.func @transform_2(%arg0: i32, %arg1: i32) -> (i32, i32, i32) {
    %c0_i32 = arith.constant 0 : i32
    %c0_i32_0 = arith.constant 0 : i32
    %c0_i32_1 = arith.constant 0 : i32
    return %c0_i32, %arg0, %c0_i32_0 : i32, i32, i32
  }
  func.func @transform_3(%arg0: i32, %arg1: i32) -> (i32, i32) {
    %c0_i32 = arith.constant 0 : i32
    return %arg0, %arg1 : i32, i32
  }
  func.func @transform_4(%arg0: i32, %arg1: i32) -> (i32, i32) {
    %c0_i32 = arith.constant 0 : i32
    return %arg0, %arg1 : i32, i32
  }
  func.func @transform_5(%arg0: i32, %arg1: i32) -> (i32, i32) {
    %c0_i32 = arith.constant 0 : i32
    return %arg0, %arg1 : i32, i32
  }
}

</mosaic_0001>

<llo_original>
// kernel: tpu_custom_call.1
$region0: #{tpu_custom_call.1}
  #allocation0 [shape = 'u32[]', space=smem, size = 0x4, offset = 0x4, fixed_abs, tag = 'smem constant byte address 0x4 - core index']
  #allocation1 [shape = 'u32[144,128]{1,0:T(1,128)}', space=vmem, size = 0x12000, scoped, tag = 'internal scratch']
  %s0 = inlined_call_operand.vmem [shape: f32[8,256], index: 0, kind: input, shape index: {}]
  %s1 = inlined_call_operand.vmem [shape: f32[3,8,1], index: 1, kind: input, shape index: {}]
  %s2 = inlined_call_operand.vmem [shape: f32[3,8,1], index: 2, kind: input, shape index: {}]
  %s3 = inlined_call_operand.hbm [shape: f32[8,256], index: 3, kind: output, shape index: {0}]
  %s4 = inlined_call_operand.hbm [shape: f32[8,256], index: 4, kind: output, shape index: {1}]
  %s5 = inlined_call_operand.hbm [shape: f32[8,256], index: 5, kind: output, shape index: {2}]
  %6 = xla_tuple %s3, %s4, %s5
  %s7 = sld [smem:[#allocation0]]
  $region61: #{tpu_custom_call.1} parent=0
    _
  %s9 = ssub.s32 1, %s7
  %s10 = scalar_select 0, %s9, %s7
  $region1: #{tpu_custom_call.1} parent=0
    #allocation2 [shape = 'u8[8192]{0}', space=vmem, size = 0x2000, scoped, tag = 'output window, operand 0']
    #allocation3 [shape = 's32[2]{0}', space=sflag, size = 0x8, scoped, tag = 'scoped memory for tpu_custom_call.1']
    #allocation4 [shape = 'u8[8192]{0}', space=vmem, size = 0x2000, scoped, tag = 'output window, operand 1']
    #allocation5 [shape = 's32[2]{0}', space=sflag, size = 0x8, scoped, tag = 'scoped memory for tpu_custom_call.1']
    #allocation6 [shape = 'u8[8192]{0}', space=vmem, size = 0x2000, scoped, tag = 'output window, operand 2']
    %11 = vsyncpa [#allocation3], 0
    %s12 = scalar_lea.sflag [#allocation3], 1
    %13 = vsyncpa %s12, 0
    %14 = vsyncpa [#allocation5], 0
    %s15 = scalar_lea.sflag [#allocation5], 1
    %16 = vsyncpa %s15, 0
    loop: start=0, step=1, limit=4
    $region2: #{tpu_custom_call.1} parent=1 // loop_pre_header
      _
    $region3: #{tpu_custom_call.1} parent=1 // loop_header
      %s18 = sphi 0, %s22
      %p19 = scmp.ge.s32.totalorder %s18, 4
      %s25 = sphi 0, %s37
      %s26 = sphi 0, %s33
      %s27 = sphi 0, %s25
      %s28 = sphi 0, %s26
      %s29 = sphi 0, %s27
      %s30 = sphi 0, %s28
      %s42 = sphi 0, %s44
      %s45 = sphi 0, %s42
      %s46 = sphi 0, %s45
      %s62 = sphi 0, %s46
      %s68 = sphi 0, %s70
      %s71 = sphi 0, %s68
      %s72 = sphi 0, %s71
      %s88 = sphi 0, %s72
      %s94 = sphi 0, %s96
      %s97 = sphi 0, %s94
      %s98 = sphi 0, %s97
      %s114 = sphi 0, %s98
      %s122 = sphi 0, %s124
      %s125 = sphi 0, %s122
      %s126 = sphi 0, %s125
      %s142 = sphi 0, %s126
      %s150 = sphi 0, %s152
      %s153 = sphi 0, %s150
      %s154 = sphi 0, %s153
      %s170 = sphi 0, %s154
      %s178 = sphi 0, %s180
      %s181 = sphi 0, %s178
      %s182 = sphi 0, %s181
      %s198 = sphi 0, %s182
    $region4: #{tpu_custom_call.1} parent=1 // loop_header_branch
      %21 = sbr.rel (%p19) target = $region8
    $region5: #{tpu_custom_call.1} parent=1 // loop_body
      %s23 = ssub.s32 %s18, 1
      %s24 = ssub.s32 %s18, 2
      %s31 = sadd.s32 1, %s26
      %p32 = scmp.ge.s32.totalorder %s31, 2
      %s33 = scalar_select %p32, 0, %s31
      %s34 = sadd.s32 1, %s25
      %s35 = scalar_select %p32, %s34, %s25
      %p36 = scmp.ge.s32.totalorder %s35, 1
      %s37 = scalar_select %p36, 0, %s35
      %s38 = ssub.s32 %s25, %s37
      %s39 = ssub.s32 %s26, %s33
      %s40 = sor.u32 %s38, %s39
      %p41 = scmp.eq.s32.totalorder %s40, 0
      %s43 = sadd.s32 %s42, 1
      %s44 = scalar_select %p41, %s42, %s43
      %p47 = pneg %p41
      %p48 = scmp.eq.s32.totalorder %s18, 1
      %p49 = por %p47, %p48
      %p50 = scmp.ne.s32.totalorder %s42, %s45
      %p51 = scmp.eq.s32.totalorder %s18, 0
      %p52 = por %p50, %p51
      %p53 = scmp.ne.s32.totalorder %s42, %s45
      %p54 = scmp.eq.s32.totalorder %s23, 1
      %p55 = por %p53, %p54
      %p56 = scmp.ne.s32.totalorder %s45, %s46
      %p57 = scmp.eq.s32.totalorder %s23, 0
      %p58 = por %p56, %p57
      %p59 = scmp.ne.s32.totalorder %s45, %s46
      %p60 = scmp.eq.s32.totalorder %s24, 1
      %p61 = por %p59, %p60
      %p63 = scmp.ne.s32.totalorder %s46, %s62
      %p64 = scmp.eq.s32.totalorder %s24, 0
      %p65 = por %p63, %p64
      %s66 = ssub.s32 %s25, %s37
      %p67 = scmp.eq.s32.totalorder %s66, 0
      %s69 = sadd.s32 %s68, 1
      %s70 = scalar_select %p67, %s68, %s69
      %p73 = pneg %p67
      %p74 = scmp.eq.s32.totalorder %s18, 1
      %p75 = por %p73, %p74
      %p76 = scmp.ne.s32.totalorder %s68, %s71
      %p77 = scmp.eq.s32.totalorder %s18, 0
      %p78 = por %p76, %p77
      %p79 = scmp.ne.s32.totalorder %s68, %s71
      %p80 = scmp.eq.s32.totalorder %s23, 1
      %p81 = por %p79, %p80
      %p82 = scmp.ne.s32.totalorder %s71, %s72
      %p83 = scmp.eq.s32.totalorder %s23, 0
      %p84 = por %p82, %p83
      %p85 = scmp.ne.s32.totalorder %s71, %s72
      %p86 = scmp.eq.s32.totalorder %s24, 1
      %p87 = por %p85, %p86
      %p89 = scmp.ne.s32.totalorder %s72, %s88
      %p90 = scmp.eq.s32.totalorder %s24, 0
      %p91 = por %p89, %p90
      %s92 = ssub.s32 %s25, %s37
      %p93 = scmp.eq.s32.totalorder %s92, 0
      %s95 = sadd.s32 %s94, 1
      %s96 = scalar_select %p93, %s94, %s95
      %p99 = pneg %p93
      %p100 = scmp.eq.s32.totalorder %s18, 1
      %p101 = por %p99, %p100
      %p102 = scmp.ne.s32.totalorder %s94, %s97
      %p103 = scmp.eq.s32.totalorder %s18, 0
      %p104 = por %p102, %p103
      %p105 = scmp.ne.s32.totalorder %s94, %s97
      %p106 = scmp.eq.s32.totalorder %s23, 1
      %p107 = por %p105, %p106
      %p108 = scmp.ne.s32.totalorder %s97, %s98
      %p109 = scmp.eq.s32.totalorder %s23, 0
      %p110 = por %p108, %p109
      %p111 = scmp.ne.s32.totalorder %s97, %s98
      %p112 = scmp.eq.s32.totalorder %s24, 1
      %p113 = por %p111, %p112
      %p115 = scmp.ne.s32.totalorder %s98, %s114
      %p116 = scmp.eq.s32.totalorder %s24, 0
      %p117 = por %p115, %p116
      %s118 = ssub.s32 %s25, %s37
      %s119 = ssub.s32 %s26, %s33
      %s120 = sor.u32 %s118, %s119
      %p121 = scmp.eq.s32.totalorder %s120, 0
      %s123 = sadd.s32 %s122, 1
      %s124 = scalar_select %p121, %s122, %s123
      %p127 = pneg %p121
      %p128 = scmp.eq.s32.totalorder %s18, 1
      %p129 = por %p127, %p128
      %p130 = scmp.ne.s32.totalorder %s122, %s125
      %p131 = scmp.eq.s32.totalorder %s18, 0
      %p132 = por %p130, %p131
      %p133 = scmp.ne.s32.totalorder %s122, %s125
      %p134 = scmp.eq.s32.totalorder %s23, 1
      %p135 = por %p133, %p134
      %p136 = scmp.ne.s32.totalorder %s125, %s126
      %p137 = scmp.eq.s32.totalorder %s23, 0
      %p138 = por %p136, %p137
      %p139 = scmp.ne.s32.totalorder %s125, %s126
      %p140 = scmp.eq.s32.totalorder %s24, 1
      %p141 = por %p139, %p140
      %p143 = scmp.ne.s32.totalorder %s126, %s142
      %p144 = scmp.eq.s32.totalorder %s24, 0
      %p145 = por %p143, %p144
      %s146 = ssub.s32 %s25, %s37
      %s147 = ssub.s32 %s26, %s33
      %s148 = sor.u32 %s146, %s147
      %p149 = scmp.eq.s32.totalorder %s148, 0
      %s151 = sadd.s32 %s150, 1
      %s152 = scalar_select %p149, %s150, %s151
      %p155 = pneg %p149
      %p156 = scmp.eq.s32.totalorder %s18, 1
      %p157 = por %p155, %p156
      %p158 = scmp.ne.s32.totalorder %s150, %s153
      %p159 = scmp.eq.s32.totalorder %s18, 0
      %p160 = por %p158, %p159
      %p161 = scmp.ne.s32.totalorder %s150, %s153
      %p162 = scmp.eq.s32.totalorder %s23, 1
      %p163 = por %p161, %p162
      %p164 = scmp.ne.s32.totalorder %s153, %s154
      %p165 = scmp.eq.s32.totalorder %s23, 0
      %p166 = por %p164, %p165
      %p167 = scmp.ne.s32.totalorder %s153, %s154
      %p168 = scmp.eq.s32.totalorder %s24, 1
      %p169 = por %p167, %p168
      %p171 = scmp.ne.s32.totalorder %s154, %s170
      %p172 = scmp.eq.s32.totalorder %s24, 0
      %p173 = por %p171, %p172
      %s174 = ssub.s32 %s25, %s37
      %s175 = ssub.s32 %s26, %s33
      %s176 = sor.u32 %s174, %s175
      %p177 = scmp.eq.s32.totalorder %s176, 0
      %s179 = sadd.s32 %s178, 1
      %s180 = scalar_select %p177, %s178, %s179
      %p183 = pneg %p177
      %p184 = scmp.eq.s32.totalorder %s18, 1
      %p185 = por %p183, %p184
      %p186 = scmp.ne.s32.totalorder %s178, %s181
      %p187 = scmp.eq.s32.totalorder %s18, 0
      %p188 = por %p186, %p187
      %p189 = scmp.ne.s32.totalorder %s178, %s181
      %p190 = scmp.eq.s32.totalorder %s23, 1
      %p191 = por %p189, %p190
      %p192 = scmp.ne.s32.totalorder %s181, %s182
      %p193 = scmp.eq.s32.totalorder %s23, 0
      %p194 = por %p192, %p193
      %p195 = scmp.ne.s32.totalorder %s181, %s182
      %p196 = scmp.eq.s32.totalorder %s24, 1
      %p197 = por %p195, %p196
      %p199 = scmp.ne.s32.totalorder %s182, %s198
      %p200 = scmp.eq.s32.totalorder %s24, 0
      %p201 = por %p199, %p200
      %p202 = scmp.le.s32.totalorder 1, %s18
      %p203 = scmp.lt.s32.totalorder %s18, 3
      %p204 = pnand %p202, %p203
      %p205 = pneg %p204
      // Predicated region
      $region9: #{tpu_custom_call.1} parent=5 // pred_check
        _
      $region10: #{tpu_custom_call.1} parent=5 // pred_check_branch
        %207 = sbr.rel (%p204) target = $region12
      $region11: #{tpu_custom_call.1} parent=5 // pred_region
        %s208 = ssub.s32 %s18, 1
        // Predicated region
        $region13: #{tpu_custom_call.1} parent=11 // pred_check
          %p209 = pneg %p84
        $region14: #{tpu_custom_call.1} parent=11 // pred_check_branch
          %211 = sbr.rel (%p209) target = $region16
        $region15: #{tpu_custom_call.1} parent=11 // pred_region
          %p212 = scmp.lt.s32.totalorder %s27, 0
          %s213 = scalar_select %p212, %s27, 0
          %s214 = smul.addr %s213, 8
          %s215 = scalar_lea.vmem %s1, %s214
        $region16: #{tpu_custom_call.1} parent=11 // pred_fallthru
          _
        // Predicated region
        $region17: #{tpu_custom_call.1} parent=11 // pred_check
          %p216 = pneg %p110
        $region18: #{tpu_custom_call.1} parent=11 // pred_check_branch
          %218 = sbr.rel (%p216) target = $region20
        $region19: #{tpu_custom_call.1} parent=11 // pred_region
          %p219 = scmp.lt.s32.totalorder %s27, 0
          %s220 = scalar_select %p219, %s27, 0
          %s221 = smul.addr %s220, 8
          %s222 = scalar_lea.vmem %s2, %s221
        $region20: #{tpu_custom_call.1} parent=11 // pred_fallthru
          _
      $region12: #{tpu_custom_call.1} parent=5 // pred_fallthru
        _
      %p223 = scmp.lt.s32.totalorder %s18, 2
      // Predicated region
      $region21: #{tpu_custom_call.1} parent=5 // pred_check
        %p224 = pneg %p223
      $region22: #{tpu_custom_call.1} parent=5 // pred_check_branch
        %226 = sbr.rel (%p224) target = $region24
      $region23: #{tpu_custom_call.1} parent=5 // pred_region
        // Predicated region
        $region25: #{tpu_custom_call.1} parent=23 // pred_check
          %p227 = pneg %p52
        $region26: #{tpu_custom_call.1} parent=23 // pred_check_branch
          %229 = sbr.rel (%p227) target = $region28
        $region27: #{tpu_custom_call.1} parent=23 // pred_region
          %p230 = scmp.lt.s32.totalorder %s25, 0
          %s231 = scalar_select %p230, %s25, 0
          %p232 = scmp.lt.s32.totalorder %s26, 1
          %s233 = scalar_select %p232, %s26, 1
          %s234 = smul.addr %s231, 2
          %s235 = sadd.s32 %s233, %s234
          %s236 = smul.addr %s235, 8
          %s237 = scalar_lea.vmem %s0, %s236
        $region28: #{tpu_custom_call.1} parent=23 // pred_fallthru
          _
      $region24: #{tpu_custom_call.1} parent=5 // pred_fallthru
        _
      %p238 = scmp.le.s32.totalorder 1, %s18
      %p239 = scmp.lt.s32.totalorder %s18, 3
      %p240 = pnand %p238, %p239
      %p241 = pneg %p240
      // Predicated region
      $region29: #{tpu_custom_call.1} parent=5 // pred_check
        _
      $region30: #{tpu_custom_call.1} parent=5 // pred_check_branch
        %243 = sbr.rel (%p240) target = $region32
      $region31: #{tpu_custom_call.1} parent=5 // pred_region
        %s244 = ssub.s32 %s18, 1
        %p245 = scmp.lt.s32.totalorder %s27, 0
        %s246 = scalar_select %p245, %s27, 0
        %p247 = scmp.lt.s32.totalorder %s28, 1
        %s248 = scalar_select %p247, %s28, 1
        %s249 = smul.addr %s246, 2
        %s250 = sadd.s32 %s248, %s249
        %s251 = smul.addr %s250, 8
        %s252 = scalar_lea.vmem %s0, %s251
        %p253 = pneg %p58
        %p254 = pneg %p55
        %p255 = scmp.lt.s32.totalorder %s27, 0
        %s256 = scalar_select %p255, %s27, 0
        %s257 = smul.addr %s256, 8
        %s258 = scalar_lea.vmem %s1, %s257
        %p259 = pneg %p84
        %p260 = pneg %p81
        %p261 = scmp.lt.s32.totalorder %s27, 0
        %s262 = scalar_select %p261, %s27, 0
        %s263 = smul.addr %s262, 8
        %s264 = scalar_lea.vmem %s2, %s263
        %p265 = pneg %p110
        %p266 = pneg %p107
        %p267 = pneg %p138
        %p268 = pneg %p135
        %s269 = sand.u32 %s125, 1
        %s270 = scalar_lea.sflag [#allocation3], %s269
        %s271 = sand.u32 %s125, 1
        %s272 = smul.addr %s271, 8
        %s273 = scalar_lea.vmem [#allocation2], %s272
        %p274 = pneg %p166
        %p275 = pneg %p163
        %s276 = sand.u32 %s23, 1
        %s277 = scalar_lea.sflag [#allocation5], %s276
        %s278 = sand.u32 %s153, 1
        %s279 = smul.addr %s278, 8
        %s280 = scalar_lea.vmem [#allocation4], %s279
        %p281 = pneg %p194
        %p282 = pneg %p191
        %s283 = sand.u32 %s23, 1
        %s284 = scalar_lea.sflag [#allocation5], %s283
        %s285 = sand.u32 %s181, 1
        %s286 = smul.addr %s285, 8
        %s287 = scalar_lea.vmem [#allocation6], %s286
        %p288 = scmp.lt.s32.totalorder %s27, 0
        %s289 = scalar_select %p288, %s27, 0
        %p290 = scmp.lt.s32.totalorder %s28, 1
        %s291 = scalar_select %p290, %s28, 1
        %s292 = smul.addr %s289, 2
        %s293 = sadd.s32 %s291, %s292
        %s294 = smul.addr %s293, 8
        %s295 = scalar_lea.vmem %s0, %s294
        %p296 = scmp.lt.s32.totalorder %s27, 0
        %s297 = scalar_select %p296, %s27, 0
        %s298 = smul.addr %s297, 8
        %s299 = scalar_lea.vmem %s1, %s298
        %p300 = scmp.lt.s32.totalorder %s27, 0
        %s301 = scalar_select %p300, %s27, 0
        %s302 = smul.addr %s301, 8
        %s303 = scalar_lea.vmem %s2, %s302
        %v304 = vld [vmem:[%s295] sm:$0xff]
        %v305 = vld [vmem:[%s299] sm:$0xff]
        %v306 = vld [vmem:[%s303] sm:$0xff]
        %308 = vset.pattern.permute.xlu0 0
        %309 = vperm.xlu0 %308, %v305
        %v310 = vpop.permute.xlu0 %309
        %v312 = vmul.f32 %v304, %v310
        %314 = vset.pattern.permute.xlu0 0
        %315 = vperm.xlu0 %314, %v306
        %v316 = vpop.permute.xlu0 %315
        %v318 = vadd.f32 %v312, %v316
        %319 = vst [vmem:[%s273] sm:$0xff] %v318
        %s320 = scalar_lea.vmem %s299, 8
        %v321 = vld [vmem:[%s320] sm:$0xff]
        %s322 = scalar_lea.vmem %s303, 8
        %v323 = vld [vmem:[%s322] sm:$0xff]
        %325 = vset.pattern.permute.xlu0 0
        %326 = vperm.xlu0 %325, %v321
        %v327 = vpop.permute.xlu0 %326
        %v329 = vmul.f32 %v304, %v327
        %331 = vset.pattern.permute.xlu0 0
        %332 = vperm.xlu0 %331, %v323
        %v333 = vpop.permute.xlu0 %332
        %v335 = vadd.f32 %v329, %v333
        %336 = vst [vmem:[%s280] sm:$0xff] %v335
        %s337 = scalar_lea.vmem %s299, 16
        %v338 = vld [vmem:[%s337] sm:$0xff]
        %s339 = scalar_lea.vmem %s303, 16
        %v340 = vld [vmem:[%s339] sm:$0xff]
        %342 = vset.pattern.permute.xlu0 0
        %343 = vperm.xlu0 %342, %v338
        %v344 = vpop.permute.xlu0 %343
        %v346 = vmul.f32 %v304, %v344
        %348 = vset.pattern.permute.xlu0 0
        %349 = vperm.xlu0 %348, %v340
        %v350 = vpop.permute.xlu0 %349
        %v352 = vadd.f32 %v346, %v350
        %353 = vst [vmem:[%s287] sm:$0xff] %v352
        %s354 = sand.u32 %s125, 1
        %s355 = scalar_lea.sflag [#allocation3], %s354
        %s356 = sand.u32 %s125, 1
        %s357 = smul.addr %s356, 8
        %s358 = scalar_lea.vmem [#allocation2], %s357
        %s359 = sand.u32 %s23, 1
        %s360 = scalar_lea.sflag [#allocation5], %s359
        %s361 = sand.u32 %s153, 1
        %s362 = smul.addr %s361, 8
        %s363 = scalar_lea.vmem [#allocation4], %s362
        %s364 = sand.u32 %s23, 1
        %s365 = scalar_lea.sflag [#allocation5], %s364
        %s366 = sand.u32 %s181, 1
        %s367 = smul.addr %s366, 8
        %s368 = scalar_lea.vmem [#allocation6], %s367
        // Predicated region
        $region33: #{tpu_custom_call.1} parent=31 // pred_check
          %p369 = pneg %p135
        $region34: #{tpu_custom_call.1} parent=31 // pred_check_branch
          %371 = sbr.rel (%p369) target = $region36
        $region35: #{tpu_custom_call.1} parent=31 // pred_region
          %s373 = ssub.s32 128, 128
          %374 = vsyncadd %s355, %s373
          %s375 = smul.addr %s27, 2
          %s376 = sadd.s32 %s28, %s375
          %s377 = smul.addr %s376, 128
          %s378 = scalar_lea.hbm %s3, %s377
          %s380 = sshll.u32 %s358, 4
          %s381 = int_to_ptr.vmem [resolvable:$true] %s380
          %383 = dma.vmem_to_hbm [thread:$0]  %s381, 128, %s378, %s355
        $region36: #{tpu_custom_call.1} parent=31 // pred_fallthru
          _
        // Predicated region
        $region37: #{tpu_custom_call.1} parent=31 // pred_check
          %p384 = pneg %p163
        $region38: #{tpu_custom_call.1} parent=31 // pred_check_branch
          %386 = sbr.rel (%p384) target = $region40
        $region39: #{tpu_custom_call.1} parent=31 // pred_region
          %s388 = ssub.s32 128, 128
          %389 = vsyncadd %s360, %s388
          %s390 = smul.addr %s27, 2
          %s391 = sadd.s32 %s28, %s390
          %s392 = smul.addr %s391, 128
          %s393 = scalar_lea.hbm %s4, %s392
          %s395 = sshll.u32 %s363, 4
          %s396 = int_to_ptr.vmem [resolvable:$true] %s395
          %398 = dma.vmem_to_hbm [thread:$0]  %s396, 128, %s393, %s360
        $region40: #{tpu_custom_call.1} parent=31 // pred_fallthru
          _
        // Predicated region
        $region41: #{tpu_custom_call.1} parent=31 // pred_check
          %p399 = pneg %p191
        $region42: #{tpu_custom_call.1} parent=31 // pred_check_branch
          %401 = sbr.rel (%p399) target = $region44
        $region43: #{tpu_custom_call.1} parent=31 // pred_region
          %s403 = ssub.s32 128, 128
          %404 = vsyncadd %s365, %s403
          %s405 = smul.addr %s27, 2
          %s406 = sadd.s32 %s28, %s405
          %s407 = smul.addr %s406, 128
          %s408 = scalar_lea.hbm %s5, %s407
          %s410 = sshll.u32 %s368, 4
          %s411 = int_to_ptr.vmem [resolvable:$true] %s410
          %413 = dma.vmem_to_hbm [thread:$0]  %s411, 128, %s408, %s365
        $region44: #{tpu_custom_call.1} parent=31 // pred_fallthru
          _
      $region32: #{tpu_custom_call.1} parent=5 // pred_fallthru
        _
      %p414 = scmp.le.s32.totalorder 2, %s18
      // Predicated region
      $region45: #{tpu_custom_call.1} parent=5 // pred_check
        %p415 = pneg %p414
      $region46: #{tpu_custom_call.1} parent=5 // pred_check_branch
        %417 = sbr.rel (%p415) target = $region48
      $region47: #{tpu_custom_call.1} parent=5 // pred_region
        %s418 = ssub.s32 %s18, 2
        // Predicated region
        $region49: #{tpu_custom_call.1} parent=47 // pred_check
          %p419 = pneg %p141
        $region50: #{tpu_custom_call.1} parent=47 // pred_check_branch
          %421 = sbr.rel (%p419) target = $region52
        $region51: #{tpu_custom_call.1} parent=47 // pred_region
          %s422 = sand.u32 %s126, 1
          %s423 = scalar_lea.sflag [#allocation3], %s422
          %s424 = sand.u32 %s126, 1
          %s425 = smul.addr %s424, 8
          %s426 = scalar_lea.vmem [#allocation2], %s425
          %427 = dma.done %s423, 128
        $region52: #{tpu_custom_call.1} parent=47 // pred_fallthru
          _
        // Predicated region
        $region53: #{tpu_custom_call.1} parent=47 // pred_check
          %p428 = pneg %p169
        $region54: #{tpu_custom_call.1} parent=47 // pred_check_branch
          %430 = sbr.rel (%p428) target = $region56
        $region55: #{tpu_custom_call.1} parent=47 // pred_region
          %s431 = sand.u32 %s24, 1
          %s432 = scalar_lea.sflag [#allocation5], %s431
          %s433 = sand.u32 %s154, 1
          %s434 = smul.addr %s433, 8
          %s435 = scalar_lea.vmem [#allocation4], %s434
          %436 = dma.done %s432, 128
        $region56: #{tpu_custom_call.1} parent=47 // pred_fallthru
          _
        // Predicated region
        $region57: #{tpu_custom_call.1} parent=47 // pred_check
          %p437 = pneg %p197
        $region58: #{tpu_custom_call.1} parent=47 // pred_check_branch
          %439 = sbr.rel (%p437) target = $region60
        $region59: #{tpu_custom_call.1} parent=47 // pred_region
          %s440 = sand.u32 %s24, 1
          %s441 = scalar_lea.sflag [#allocation5], %s440
          %s442 = sand.u32 %s182, 1
          %s443 = smul.addr %s442, 8
          %s444 = scalar_lea.vmem [#allocation6], %s443
          %445 = dma.done %s441, 128
        $region60: #{tpu_custom_call.1} parent=47 // pred_fallthru
          _
      $region48: #{tpu_custom_call.1} parent=5 // pred_fallthru
        _
    $region6: #{tpu_custom_call.1} parent=1 // loop_footer
      %s22 = sadd.s32 1, %s18
    $region7: #{tpu_custom_call.1} parent=1 // loop_footer_branch
      %17 = sbr.rel target = $region3
    $region8: #{tpu_custom_call.1} parent=1 // loop_exit
      _
    %446 = vsyncpa [#allocation3], 1
    %s447 = scalar_lea.sflag [#allocation3], 1
    %448 = vsyncpa %s447, 1
    %449 = vsyncpa [#allocation5], 1
    %s450 = scalar_lea.sflag [#allocation5], 1
    %451 = vsyncpa %s450, 1

</llo_original>
